<compile_context>
chip_gen: v6e
topology: v6e:2x2x1
jax: 0.10.0
libtpu: 0.0.40
codegen_flags: <defaults>
</compile_context>

<pallas_src>
import jax
import jax.numpy as jnp
from jax.experimental import pallas as pl
from jax.experimental.pallas import tpu as pltpu


def _round_up(n, m):
    return (n + m - 1) // m * m


def classifier_kernel(x_ref, w1_ref, b1_ref, w2_ref, b2_ref,
                      w3_ref, b3_ref, w4t_ref, b4_ref, o_ref):
    # fc1 + ReLU : (TB, L) bf16 @ (L, 32) bf16 -> f32 accumulate
    h = jnp.dot(x_ref[...], w1_ref[...], preferred_element_type=jnp.float32)
    h = jnp.maximum(h + b1_ref[...], 0.0)

    # fc2 + ReLU
    h = jnp.dot(h.astype(jnp.bfloat16), w2_ref[...],
                preferred_element_type=jnp.float32)
    h = jnp.maximum(h + b2_ref[...], 0.0)

    # fc3 + ReLU
    h = jnp.dot(h.astype(jnp.bfloat16), w3_ref[...],
                preferred_element_type=jnp.float32)
    h = jnp.maximum(h + b3_ref[...], 0.0)

    # Dropout(p=0.6): inference-mode identity.
    # TODO(synk): train-mode dropout with pltpu.prng_seed + prng_random_bits.

    # fc4 + Sigmoid, computed transposed so the output block is lane-dense:
    #   z^T = W4^T (1,16) @ h^T (16,TB) -> (1, TB)
    z = jnp.dot(w4t_ref[...], h.T, preferred_element_type=jnp.float32)
    z = z + b4_ref[...]
    o_ref[...] = (jnp.exp(-z) + 1.0)
    o_ref[...] = pl.reciprocal(o_ref[...], approx=True).astype(o_ref.dtype)


def classifier_forward(x, params, *, block_rows=1024):
    """x: (B, latent_dim) float32; params: dict of weights/biases.

    Returns (B, 1) float32 (sigmoid probabilities)."""
    assert block_rows % 128 == 0
    B, latent = x.shape

    # Batch tile: big (>=128-aligned) when B is large, full batch when small.
    TB = min(block_rows, _round_up(B, 8))
    Bp = _round_up(B, TB)
    if Bp != B:
        x = jnp.pad(x, ((0, Bp - B), (0, 0)))
    num_tiles = Bp // TB

    # bf16 for the heavy operands (x, big weights); biases and the tiny final
    # layer stay f32 (negligible traffic, better accuracy, simplest lowering).
    xb = x.astype(jnp.bfloat16)
    w1 = params["w1"].astype(jnp.bfloat16)
    w2 = params["w2"].astype(jnp.bfloat16)
    w3 = params["w3"].astype(jnp.bfloat16)
    w4t = params["w4"].T.astype(jnp.float32)          # (1, 16)
    b1 = params["b1"].astype(jnp.float32)
    b2 = params["b2"].astype(jnp.float32)
    b3 = params["b3"].astype(jnp.float32)
    b4 = params["b4"].astype(jnp.float32)              # (1, 1)

    args = (xb, w1, b1, w2, b2, w3, b3, w4t, b4)

    def resident_spec(a):
        # Constant index_map -> block stays VMEM-resident across the grid.
        # Default-arg capture avoids the late-binding closure bug.
        return pl.BlockSpec(a.shape, lambda i, _nd=a.ndim: (0,) * _nd)

    in_specs = [pl.BlockSpec((TB, latent), lambda i: (i, 0))]
    in_specs += [resident_spec(a) for a in args[1:]]

    out_t = pl.pallas_call(
        classifier_kernel,
        out_shape=jax.ShapeDtypeStruct((1, Bp), jnp.float32),
        grid=(num_tiles,),
        in_specs=in_specs,
        out_specs=pl.BlockSpec((1, TB), lambda i: (0, i)),
        compiler_params=pltpu.CompilerParams(
            dimension_semantics=("parallel",)),
    )(*args)

    return out_t.reshape(-1)[:B].reshape(B, 1)


def init_params(key, latent_dim):
    """Deterministic init mimicking nn.Linear default (uniform +/- 1/sqrt(fan_in)).

    Weights stored (in, out); biases stored (1, out)."""
    dims = [(latent_dim, 32), (32, 16), (16, 16), (16, 1)]
    params = {}
    keys = jax.random.split(key, 2 * len(dims))
    for i, (fan_in, fan_out) in enumerate(dims):
        bound = 1.0 / jnp.sqrt(jnp.float32(fan_in))
        w = jax.random.uniform(keys[2 * i], (fan_in, fan_out),
                               minval=-bound, maxval=bound, dtype=jnp.float32)
        b = jax.random.uniform(keys[2 * i + 1], (1, fan_out),
                               minval=-bound, maxval=bound, dtype=jnp.float32)
        params[f"w{i + 1}"] = w
        params[f"b{i + 1}"] = b
    return params


if __name__ == "__main__":
    latent_dim = 32
    batch = 128

    key = jax.random.PRNGKey(0)
    k_params, k_x = jax.random.split(key)
    params = init_params(k_params, latent_dim)
    x = jax.random.normal(k_x, (batch, latent_dim), dtype=jnp.float32)

    out = classifier_forward(x, params)
    out = jax.block_until_ready(out)

    # Reference in plain f32 JAX (eval-mode dropout = identity).
    h = jnp.maximum(x @ params["w1"] + params["b1"], 0.0)
    h = jnp.maximum(h @ params["w2"] + params["b2"], 0.0)
    h = jnp.maximum(h @ params["w3"] + params["b3"], 0.0)
    ref = jax.nn.sigmoid(h @ params["w4"] + params["b4"])

    assert out.shape == (batch, 1), out.shape
    # bf16 inputs + approx reciprocal -> compare with a loose tolerance.
    assert jnp.allclose(out, ref, atol=2e-2, rtol=2e-2), float(
        jnp.max(jnp.abs(out - ref)))
    print("KERNEL_OK")
</pallas_src>

<mosaic_0001>
module attributes {stable_mosaic.version = 11 : i64} {
  func.func @classifier_kernel(%arg0: i32, %arg1: memref<128x32xbf16, #tpu.memory_space<vmem>>, %arg2: memref<32x32xbf16, #tpu.memory_space<vmem>>, %arg3: memref<1x32xf32, #tpu.memory_space<vmem>>, %arg4: memref<32x16xbf16, #tpu.memory_space<vmem>>, %arg5: memref<1x16xf32, #tpu.memory_space<vmem>>, %arg6: memref<16x16xbf16, #tpu.memory_space<vmem>>, %arg7: memref<1x16xf32, #tpu.memory_space<vmem>>, %arg8: memref<1x16xf32, #tpu.memory_space<vmem>>, %arg9: memref<1x1xf32, #tpu.memory_space<vmem>>, %arg10: memref<1x128xf32, #tpu.memory_space<vmem>>) attributes {dimension_semantics = [#tpu.dimension_semantics<parallel>], iteration_bounds = array<i64: 1>, scalar_prefetch = 0 : i64, scratch_operands = 0 : i64, tpu.core_type = #tpu.core_type<tc>, window_params = [{transform_indices = @transform_0, window_bounds = array<i64: 128, 32>}, {pipeline_mode = #tpu.pipeline_mode<synchronous>, transform_indices = @transform_1, window_bounds = array<i64: 32, 32>}, {pipeline_mode = #tpu.pipeline_mode<synchronous>, transform_indices = @transform_2, window_bounds = array<i64: 1, 32>}, {pipeline_mode = #tpu.pipeline_mode<synchronous>, transform_indices = @transform_3, window_bounds = array<i64: 32, 16>}, {pipeline_mode = #tpu.pipeline_mode<synchronous>, transform_indices = @transform_4, window_bounds = array<i64: 1, 16>}, {pipeline_mode = #tpu.pipeline_mode<synchronous>, transform_indices = @transform_5, window_bounds = array<i64: 16, 16>}, {pipeline_mode = #tpu.pipeline_mode<synchronous>, transform_indices = @transform_6, window_bounds = array<i64: 1, 16>}, {pipeline_mode = #tpu.pipeline_mode<synchronous>, transform_indices = @transform_7, window_bounds = array<i64: 1, 16>}, {pipeline_mode = #tpu.pipeline_mode<synchronous>, transform_indices = @transform_8, window_bounds = array<i64: 1, 1>}, {transform_indices = @transform_9, window_bounds = array<i64: 1, 128>}]} {
    %c0 = arith.constant 0 : index
    %c0_0 = arith.constant 0 : index
    %0 = vector.load %arg1[%c0, %c0_0] : memref<128x32xbf16, #tpu.memory_space<vmem>>, vector<128x32xbf16>
    %c0_1 = arith.constant 0 : index
    %c0_2 = arith.constant 0 : index
    %1 = vector.load %arg2[%c0_1, %c0_2] : memref<32x32xbf16, #tpu.memory_space<vmem>>, vector<32x32xbf16>
    %cst = arith.constant dense<0.000000e+00> : vector<128x32xf32>
    %2 = tpu.matmul %0, %1, %cst {dimension_numbers = #tpu.dot_dimension_numbers<[1], [0], [0], [1], [0, 0, 1, 1], [], []>} : vector<128x32xbf16>, vector<32x32xbf16>, vector<128x32xf32> -> vector<128x32xf32>
    %c0_3 = arith.constant 0 : index
    %c0_4 = arith.constant 0 : index
    %3 = vector.load %arg3[%c0_3, %c0_4] : memref<1x32xf32, #tpu.memory_space<vmem>>, vector<1x32xf32>
    %4 = vector.broadcast %3 : vector<1x32xf32> to vector<128x32xf32>
    %5 = arith.addf %2, %4 : vector<128x32xf32>
    %cst_5 = arith.constant 0.000000e+00 : f32
    %6 = vector.broadcast %cst_5 : f32 to vector<128x32xf32>
    %7 = arith.maximumf %5, %6 : vector<128x32xf32>
    %8 = arith.truncf %7 : vector<128x32xf32> to vector<128x32xbf16>
    %c0_6 = arith.constant 0 : index
    %c0_7 = arith.constant 0 : index
    %9 = vector.load %arg4[%c0_6, %c0_7] : memref<32x16xbf16, #tpu.memory_space<vmem>>, vector<32x16xbf16>
    %cst_8 = arith.constant dense<0.000000e+00> : vector<128x16xf32>
    %10 = tpu.matmul %8, %9, %cst_8 {dimension_numbers = #tpu.dot_dimension_numbers<[1], [0], [0], [1], [0, 0, 1, 1], [], []>} : vector<128x32xbf16>, vector<32x16xbf16>, vector<128x16xf32> -> vector<128x16xf32>
    %c0_9 = arith.constant 0 : index
    %c0_10 = arith.constant 0 : index
    %11 = vector.load %arg5[%c0_9, %c0_10] : memref<1x16xf32, #tpu.memory_space<vmem>>, vector<1x16xf32>
    %12 = vector.broadcast %11 : vector<1x16xf32> to vector<128x16xf32>
    %13 = arith.addf %10, %12 : vector<128x16xf32>
    %cst_11 = arith.constant 0.000000e+00 : f32
    %14 = vector.broadcast %cst_11 : f32 to vector<128x16xf32>
    %15 = arith.maximumf %13, %14 : vector<128x16xf32>
    %16 = arith.truncf %15 : vector<128x16xf32> to vector<128x16xbf16>
    %c0_12 = arith.constant 0 : index
    %c0_13 = arith.constant 0 : index
    %17 = vector.load %arg6[%c0_12, %c0_13] : memref<16x16xbf16, #tpu.memory_space<vmem>>, vector<16x16xbf16>
    %cst_14 = arith.constant dense<0.000000e+00> : vector<128x16xf32>
    %18 = tpu.matmul %16, %17, %cst_14 {dimension_numbers = #tpu.dot_dimension_numbers<[1], [0], [0], [1], [0, 0, 1, 1], [], []>} : vector<128x16xbf16>, vector<16x16xbf16>, vector<128x16xf32> -> vector<128x16xf32>
    %c0_15 = arith.constant 0 : index
    %c0_16 = arith.constant 0 : index
    %19 = vector.load %arg7[%c0_15, %c0_16] : memref<1x16xf32, #tpu.memory_space<vmem>>, vector<1x16xf32>
    %20 = vector.broadcast %19 : vector<1x16xf32> to vector<128x16xf32>
    %21 = arith.addf %18, %20 : vector<128x16xf32>
    %cst_17 = arith.constant 0.000000e+00 : f32
    %22 = vector.broadcast %cst_17 : f32 to vector<128x16xf32>
    %23 = arith.maximumf %21, %22 : vector<128x16xf32>
    %c0_18 = arith.constant 0 : index
    %c0_19 = arith.constant 0 : index
    %24 = vector.load %arg8[%c0_18, %c0_19] : memref<1x16xf32, #tpu.memory_space<vmem>>, vector<1x16xf32>
    %25 = tpu.transpose %23, [1, 0] : vector<128x16xf32> -> vector<16x128xf32>
    %cst_20 = arith.constant dense<0.000000e+00> : vector<1x128xf32>
    %26 = tpu.matmul %24, %25, %cst_20 {dimension_numbers = #tpu.dot_dimension_numbers<[1], [0], [0], [1], [0, 0, 1, 1], [], []>} : vector<1x16xf32>, vector<16x128xf32>, vector<1x128xf32> -> vector<1x128xf32>
    %c0_21 = arith.constant 0 : index
    %c0_22 = arith.constant 0 : index
    %27 = vector.load %arg9[%c0_21, %c0_22] : memref<1x1xf32, #tpu.memory_space<vmem>>, vector<1x1xf32>
    %28 = vector.broadcast %27 : vector<1x1xf32> to vector<1x128xf32>
    %29 = arith.addf %26, %28 : vector<1x128xf32>
    %cst_23 = arith.constant 0.000000e+00 : f32
    %30 = vector.broadcast %cst_23 : f32 to vector<1x128xf32>
    %31 = arith.subf %30, %29 : vector<1x128xf32>
    %32 = math.exp %31 : vector<1x128xf32>
    %cst_24 = arith.constant 1.000000e+00 : f32
    %33 = vector.broadcast %cst_24 : f32 to vector<1x128xf32>
    %34 = arith.addf %32, %33 : vector<1x128xf32>
    %c0_25 = arith.constant 0 : index
    %c0_26 = arith.constant 0 : index
    %35 = vector.load %arg10[%c0_25, %c0_26] : memref<1x128xf32, #tpu.memory_space<vmem>>, vector<1x128xf32>
    tpu.vector_store %arg10[%c0_25, %c0_26], %34 {strides = array<i32>} : memref<1x128xf32, #tpu.memory_space<vmem>>, vector<1x128xf32>,
    %c0_27 = arith.constant 0 : index
    %c0_28 = arith.constant 0 : index
    %36 = vector.load %arg10[%c0_27, %c0_28] : memref<1x128xf32, #tpu.memory_space<vmem>>, vector<1x128xf32>
    %37 = tpu.reciprocal %36 {approx = true} : vector<1x128xf32> -> vector<1x128xf32>
    %c0_29 = arith.constant 0 : index
    %c0_30 = arith.constant 0 : index
    %38 = vector.load %arg10[%c0_29, %c0_30] : memref<1x128xf32, #tpu.memory_space<vmem>>, vector<1x128xf32>
    tpu.vector_store %arg10[%c0_29, %c0_30], %37 {strides = array<i32>} : memref<1x128xf32, #tpu.memory_space<vmem>>, vector<1x128xf32>,
    return
  }
  func.func @transform_0(%arg0: i32) -> (i32, i32) {
    %c0_i32 = arith.constant 0 : i32
    %c0_i32_0 = arith.constant 0 : i32
    return %arg0, %c0_i32 : i32, i32
  }
  func.func @transform_1(%arg0: i32) -> (i32, i32) {
    %c0_i32 = arith.constant 0 : i32
    %c0_i32_0 = arith.constant 0 : i32
    %c0_i32_1 = arith.constant 0 : i32
    return %c0_i32, %c0_i32_0 : i32, i32
  }
  func.func @transform_2(%arg0: i32) -> (i32, i32) {
    %c0_i32 = arith.constant 0 : i32
    %c0_i32_0 = arith.constant 0 : i32
    %c0_i32_1 = arith.constant 0 : i32
    return %c0_i32, %c0_i32_0 : i32, i32
  }
  func.func @transform_3(%arg0: i32) -> (i32, i32) {
    %c0_i32 = arith.constant 0 : i32
    %c0_i32_0 = arith.constant 0 : i32
    %c0_i32_1 = arith.constant 0 : i32
    return %c0_i32, %c0_i32_0 : i32, i32
  }
  func.func @transform_4(%arg0: i32) -> (i32, i32) {
    %c0_i32 = arith.constant 0 : i32
    %c0_i32_0 = arith.constant 0 : i32
    %c0_i32_1 = arith.constant 0 : i32
    return %c0_i32, %c0_i32_0 : i32, i32
  }
  func.func @transform_5(%arg0: i32) -> (i32, i32) {
    %c0_i32 = arith.constant 0 : i32
    %c0_i32_0 = arith.constant 0 : i32
    %c0_i32_1 = arith.constant 0 : i32
    return %c0_i32, %c0_i32_0 : i32, i32
  }
  func.func @transform_6(%arg0: i32) -> (i32, i32) {
    %c0_i32 = arith.constant 0 : i32
    %c0_i32_0 = arith.constant 0 : i32
    %c0_i32_1 = arith.constant 0 : i32
    return %c0_i32, %c0_i32_0 : i32, i32
  }
  func.func @transform_7(%arg0: i32) -> (i32, i32) {
    %c0_i32 = arith.constant 0 : i32
    %c0_i32_0 = arith.constant 0 : i32
    %c0_i32_1 = arith.constant 0 : i32
    return %c0_i32, %c0_i32_0 : i32, i32
  }
  func.func @transform_8(%arg0: i32) -> (i32, i32) {
    %c0_i32 = arith.constant 0 : i32
    %c0_i32_0 = arith.constant 0 : i32
    %c0_i32_1 = arith.constant 0 : i32
    return %c0_i32, %c0_i32_0 : i32, i32
  }
  func.func @transform_9(%arg0: i32) -> (i32, i32) {
    %c0_i32 = arith.constant 0 : i32
    %c0_i32_0 = arith.constant 0 : i32
    return %c0_i32, %arg0 : i32, i32
  }
}

</mosaic_0001>

<llo_original>
// kernel: tpu_custom_call.1
$region0: #{tpu_custom_call.1}
  #allocation0 [shape = 'u32[]', space=smem, size = 0x4, offset = 0x4, fixed_abs, tag = 'smem constant byte address 0x4 - core index']
  #allocation1 [shape = 'u32[144,128]{1,0:T(1,128)}', space=vmem, size = 0x12000, scoped, tag = 'internal scratch']
  #allocation2 [shape = 'f32[1,1]{1,0:T(1,128)S(1)}', space=vmem, size = 0x200, scoped, tag = 'scoped memory for tpu_custom_call.1']
  %s0 = inlined_call_operand.vmem [shape: bf16[128,32], index: 0, kind: input, shape index: {}]
  %s1 = inlined_call_operand.vmem [shape: bf16[32,32], index: 1, kind: input, shape index: {}]
  %s2 = inlined_call_operand.vmem [shape: f32[1,32], index: 2, kind: input, shape index: {}]
  %s3 = inlined_call_operand.vmem [shape: bf16[32,16], index: 3, kind: input, shape index: {}]
  %s4 = inlined_call_operand.vmem [shape: f32[1,16], index: 4, kind: input, shape index: {}]
  %s5 = inlined_call_operand.vmem [shape: bf16[16,16], index: 5, kind: input, shape index: {}]
  %s6 = inlined_call_operand.vmem [shape: f32[1,16], index: 6, kind: input, shape index: {}]
  %s7 = inlined_call_operand.vmem [shape: f32[1,16], index: 7, kind: input, shape index: {}]
  %s8 = inlined_call_operand.<no memory space> [shape: f32[1,1], index: 8, kind: input, shape index: {}]
  %s9 = inlined_call_operand.hbm [shape: f32[1,128], index: 9, kind: output, shape index: {}]
  %s10 = sld [smem:[#allocation0]]
  $region46: #{tpu_custom_call.1} parent=0
    _
  %s12 = ssub.s32 1, %s10
  %s13 = scalar_select 0, %s12, %s10
  %v14 = vstv %s8
  %15 = vst [vmem:[#allocation2] sm:$0x1] %v14
  $region1: #{tpu_custom_call.1} parent=0
    #allocation3 [shape = 'u8[512]{0}', space=vmem, size = 0x400, scoped, tag = 'output window, operand 0, single buffered']
    #allocation4 [shape = 's32[1]{0}', space=sflag, size = 0x4, scoped, tag = 'scoped memory for tpu_custom_call.1']
    %16 = vsyncpa [#allocation4], 0
    // Predicated region
    $region2: #{tpu_custom_call.1} parent=1 // pred_check
      _
    $region3: #{tpu_custom_call.1} parent=1 // pred_check_branch
      %18 = sbr.rel (0) target = $region5
    $region4: #{tpu_custom_call.1} parent=1 // pred_region
      _
    $region5: #{tpu_custom_call.1} parent=1 // pred_fallthru
      _
    // Predicated region
    $region6: #{tpu_custom_call.1} parent=1 // pred_check
      _
    $region7: #{tpu_custom_call.1} parent=1 // pred_check_branch
      %20 = sbr.rel (0) target = $region9
    $region8: #{tpu_custom_call.1} parent=1 // pred_region
      _
    $region9: #{tpu_custom_call.1} parent=1 // pred_fallthru
      _
    // Predicated region
    $region10: #{tpu_custom_call.1} parent=1 // pred_check
      _
    $region11: #{tpu_custom_call.1} parent=1 // pred_check_branch
      %22 = sbr.rel (0) target = $region13
    $region12: #{tpu_custom_call.1} parent=1 // pred_region
      _
    $region13: #{tpu_custom_call.1} parent=1 // pred_fallthru
      _
    // Predicated region
    $region14: #{tpu_custom_call.1} parent=1 // pred_check
      _
    $region15: #{tpu_custom_call.1} parent=1 // pred_check_branch
      %24 = sbr.rel (0) target = $region17
    $region16: #{tpu_custom_call.1} parent=1 // pred_region
      _
    $region17: #{tpu_custom_call.1} parent=1 // pred_fallthru
      _
    // Predicated region
    $region18: #{tpu_custom_call.1} parent=1 // pred_check
      _
    $region19: #{tpu_custom_call.1} parent=1 // pred_check_branch
      %26 = sbr.rel (0) target = $region21
    $region20: #{tpu_custom_call.1} parent=1 // pred_region
      _
    $region21: #{tpu_custom_call.1} parent=1 // pred_fallthru
      _
    // Predicated region
    $region22: #{tpu_custom_call.1} parent=1 // pred_check
      _
    $region23: #{tpu_custom_call.1} parent=1 // pred_check_branch
      %28 = sbr.rel (0) target = $region25
    $region24: #{tpu_custom_call.1} parent=1 // pred_region
      _
    $region25: #{tpu_custom_call.1} parent=1 // pred_fallthru
      _
    // Predicated region
    $region26: #{tpu_custom_call.1} parent=1 // pred_check
      _
    $region27: #{tpu_custom_call.1} parent=1 // pred_check_branch
      %30 = sbr.rel (0) target = $region29
    $region28: #{tpu_custom_call.1} parent=1 // pred_region
      _
    $region29: #{tpu_custom_call.1} parent=1 // pred_fallthru
      _
    // Predicated region
    $region30: #{tpu_custom_call.1} parent=1 // pred_check
      _
    $region31: #{tpu_custom_call.1} parent=1 // pred_check_branch
      %32 = sbr.rel (0) target = $region33
    $region32: #{tpu_custom_call.1} parent=1 // pred_region
      _
    $region33: #{tpu_custom_call.1} parent=1 // pred_fallthru
      _
    // Predicated region
    $region34: #{tpu_custom_call.1} parent=1 // pred_check
      _
    $region35: #{tpu_custom_call.1} parent=1 // pred_check_branch
      %34 = sbr.rel (0) target = $region37
    $region36: #{tpu_custom_call.1} parent=1 // pred_region
      _
    $region37: #{tpu_custom_call.1} parent=1 // pred_fallthru
      _
    %v36 = vld [vmem:[%s0] sm:$0xf]
    %v37 = vld [vmem:[%s0 + $0x4] sm:$0xf]
    %v38 = vld [vmem:[%s0 + $0x8] sm:$0xf]
    %v39 = vld [vmem:[%s0 + $0xc] sm:$0xf]
    %v40 = vld [vmem:[%s0 + $0x10] sm:$0xf]
    %v41 = vld [vmem:[%s0 + $0x14] sm:$0xf]
    %v42 = vld [vmem:[%s0 + $0x18] sm:$0xf]
    %v43 = vld [vmem:[%s0 + $0x1c] sm:$0xf]
    %v44 = vld [vmem:[%s0 + $0x20] sm:$0xf]
    %v45 = vld [vmem:[%s0 + $0x24] sm:$0xf]
    %v46 = vld [vmem:[%s0 + $0x28] sm:$0xf]
    %v47 = vld [vmem:[%s0 + $0x2c] sm:$0xf]
    %v48 = vld [vmem:[%s0 + $0x30] sm:$0xf]
    %v49 = vld [vmem:[%s0 + $0x34] sm:$0xf]
    %v50 = vld [vmem:[%s0 + $0x38] sm:$0xf]
    %v51 = vld [vmem:[%s0 + $0x3c] sm:$0xf]
    %v52 = vld [vmem:[%s1] sm:$0xf]
    %v53 = vld [vmem:[%s1 + $0x4] sm:$0xf]
    %v54 = vld [vmem:[%s1 + $0x8] sm:$0xf]
    %v55 = vld [vmem:[%s1 + $0xc] sm:$0xf]
    %v56 = vld [vmem:[%s2] sm:$0x1]
    %v58 = vlaneseq
    %v59 = vshrl.u32 %v58, 7
    %v60 = vsub.s32 0, %v59
    %v61 = vrot.slane %v56, %v60
    %v79 = vunpack.c.l.b16 %v36
    %v80 = vunpack.c.l.b16 %v37
    %v81 = vunpack.c.l.b16 %v38
    %v82 = vunpack.c.l.b16 %v39
    %v83 = vunpack.c.l.b16 %v40
    %v84 = vunpack.c.l.b16 %v41
    %v85 = vunpack.c.l.b16 %v42
    %v86 = vunpack.c.l.b16 %v43
    %v87 = vunpack.c.l.b16 %v44
    %v88 = vunpack.c.l.b16 %v45
    %v89 = vunpack.c.l.b16 %v46
    %v90 = vunpack.c.l.b16 %v47
    %v91 = vunpack.c.l.b16 %v48
    %v92 = vunpack.c.l.b16 %v49
    %v93 = vunpack.c.l.b16 %v50
    %v94 = vunpack.c.l.b16 %v51
    %v95 = vpack.c.b16 %v80, %v79
    %v96 = vpack.c.b16 %v82, %v81
    %v97 = vpack.c.b16 %v84, %v83
    %v98 = vpack.c.b16 %v86, %v85
    %v99 = vpack.c.b16 %v88, %v87
    %v100 = vpack.c.b16 %v90, %v89
    %v101 = vpack.c.b16 %v92, %v91
    %v102 = vpack.c.b16 %v94, %v93
    %v107 = vunpack.c.l.b16 %v52
    %v108 = vunpack.c.l.b16 %v53
    %v109 = vunpack.c.l.b16 %v54
    %v110 = vunpack.c.l.b16 %v55
    %v111 = vpack.c.b16 %v108, %v107
    %v112 = vpack.c.b16 %v110, %v109
    %vm115 = vcmask 261120
    %v117 = vsel %vm115, %v95, 0
    %v120 = vsel %vm115, %v96, 0
    %v123 = vsel %vm115, %v97, 0
    %v126 = vsel %vm115, %v98, 0
    %v129 = vsel %vm115, %v99, 0
    %v132 = vsel %vm115, %v100, 0
    %v135 = vsel %vm115, %v101, 0
    %v138 = vsel %vm115, %v102, 0
    %140 = vmatprep.subr.bf16.mxu0 0
    %141 = vmatpush1.bf16.msra.mxu0 0
    %142 = vmatprep.subr.bf16.mxu0 0
    %143 = vmatpush1.bf16.msra.mxu0 0
    %144 = vmatprep.subr.bf16.mxu0 0
    %145 = vmatpush1.bf16.msra.mxu0 0
    %146 = vmatprep.subr.bf16.mxu0 0
    %147 = vmatpush1.bf16.msra.mxu0 0
    %148 = vmatprep.subr.bf16.mxu0 0
    %149 = vmatpush1.bf16.msra.mxu0 0
    %150 = vmatprep.subr.bf16.mxu0 0
    %151 = vmatpush1.bf16.msra.mxu0 0
    %152 = vmatprep.subr.bf16.mxu0 0
    %153 = vmatpush1.bf16.msra.mxu0 %v112
    %154 = vmatprep.subr.bf16.mxu0 0
    %155 = vmatpush1.bf16.msra.mxu0 %v111
    %156 = vmatprep.subr.bf16.mxu0 0
    %157 = vmatpush2.bf16.msra.mxu0 0
    %158 = vmatprep.subr.bf16.mxu0 0
    %159 = vmatpush2.bf16.msra.mxu0 0
    %160 = vmatprep.subr.bf16.mxu0 0
    %161 = vmatpush2.bf16.msra.mxu0 0
    %162 = vmatprep.subr.bf16.mxu0 0
    %163 = vmatpush2.bf16.msra.mxu0 0
    %164 = vmatprep.subr.bf16.mxu0 0
    %165 = vmatpush2.bf16.msra.mxu0 0
    %166 = vmatprep.subr.bf16.mxu0 0
    %167 = vmatpush2.bf16.msra.mxu0 0
    %168 = vmatprep.subr.bf16.mxu0 0
    %169 = vmatpush2.bf16.msra.mxu0 0
    %170 = vmatprep.subr.bf16.mxu0 0
    %171 = vmatpush2.bf16.msra.mxu0 0
    %172 = vmatprep.mubr.bf16.mxu0 0
    %173 = vmatmul.mubr.bf16.gmra.mxu0 %v117
    %v174 = vpop.f32.mrf.mxu0
    %v175 = vadd.f32 %v61, %v174
    %v176 = vpop.f32.mrf.mxu0
    %v177 = vpop.f32.mrf.mxu0
    %v178 = vadd.f32 %v61, %v177
    %v179 = vpop.f32.mrf.mxu0
    %180 = vmatprep.mubr.bf16.mxu0 0
    %181 = vmatmul.mubr.bf16.gmra.mxu0 %v120
    %v182 = vpop.f32.mrf.mxu0
    %v183 = vadd.f32 %v61, %v182
    %v184 = vpop.f32.mrf.mxu0
    %v185 = vpop.f32.mrf.mxu0
    %v186 = vadd.f32 %v61, %v185
    %v187 = vpop.f32.mrf.mxu0
    %188 = vmatprep.mubr.bf16.mxu0 0
    %189 = vmatmul.mubr.bf16.gmra.mxu0 %v123
    %v190 = vpop.f32.mrf.mxu0
    %v191 = vadd.f32 %v61, %v190
    %v192 = vpop.f32.mrf.mxu0
    %v193 = vpop.f32.mrf.mxu0
    %v194 = vadd.f32 %v61, %v193
    %v195 = vpop.f32.mrf.mxu0
    %196 = vmatprep.mubr.bf16.mxu0 0
    %197 = vmatmul.mubr.bf16.gmra.mxu0 %v126
    %v198 = vpop.f32.mrf.mxu0
    %v199 = vadd.f32 %v61, %v198
    %v200 = vpop.f32.mrf.mxu0
    %v201 = vpop.f32.mrf.mxu0
    %v202 = vadd.f32 %v61, %v201
    %v203 = vpop.f32.mrf.mxu0
    %204 = vmatprep.mubr.bf16.mxu0 0
    %205 = vmatmul.mubr.bf16.gmra.mxu0 %v129
    %v206 = vpop.f32.mrf.mxu0
    %v207 = vadd.f32 %v61, %v206
    %v208 = vpop.f32.mrf.mxu0
    %v209 = vpop.f32.mrf.mxu0
    %v210 = vadd.f32 %v61, %v209
    %v211 = vpop.f32.mrf.mxu0
    %212 = vmatprep.mubr.bf16.mxu0 0
    %213 = vmatmul.mubr.bf16.gmra.mxu0 %v132
    %v214 = vpop.f32.mrf.mxu0
    %v215 = vadd.f32 %v61, %v214
    %v216 = vpop.f32.mrf.mxu0
    %v217 = vpop.f32.mrf.mxu0
    %v218 = vadd.f32 %v61, %v217
    %v219 = vpop.f32.mrf.mxu0
    %220 = vmatprep.mubr.bf16.mxu0 0
    %221 = vmatmul.mubr.bf16.gmra.mxu0 %v135
    %v222 = vpop.f32.mrf.mxu0
    %v223 = vadd.f32 %v61, %v222
    %v224 = vpop.f32.mrf.mxu0
    %v225 = vpop.f32.mrf.mxu0
    %v226 = vadd.f32 %v61, %v225
    %v227 = vpop.f32.mrf.mxu0
    %228 = vmatprep.mubr.bf16.mxu0 0
    %229 = vmatmul.mubr.bf16.gmra.mxu0 %v138
    %v230 = vpop.f32.mrf.mxu0
    %v231 = vadd.f32 %v61, %v230
    %v232 = vpop.f32.mrf.mxu0
    %v233 = vpop.f32.mrf.mxu0
    %v234 = vadd.f32 %v61, %v233
    %v235 = vpop.f32.mrf.mxu0
    %236 = vdwg.mxu0
    %v237 = vmax.f32 %v175, 0.0
    %v238 = vmax.f32 %v178, 0.0
    %v239 = vmax.f32 %v183, 0.0
    %v240 = vmax.f32 %v186, 0.0
    %v241 = vmax.f32 %v191, 0.0
    %v242 = vmax.f32 %v194, 0.0
    %v243 = vmax.f32 %v199, 0.0
    %v244 = vmax.f32 %v202, 0.0
    %v245 = vmax.f32 %v207, 0.0
    %v246 = vmax.f32 %v210, 0.0
    %v247 = vmax.f32 %v215, 0.0
    %v248 = vmax.f32 %v218, 0.0
    %v249 = vmax.f32 %v223, 0.0
    %v250 = vmax.f32 %v226, 0.0
    %v251 = vmax.f32 %v231, 0.0
    %v252 = vmax.f32 %v234, 0.0
    %v253 = vpack.c.bf16 %v238, %v237
    %v254 = vpack.c.bf16 %v240, %v239
    %v255 = vpack.c.bf16 %v242, %v241
    %v256 = vpack.c.bf16 %v244, %v243
    %v257 = vpack.c.bf16 %v246, %v245
    %v258 = vpack.c.bf16 %v248, %v247
    %v259 = vpack.c.bf16 %v250, %v249
    %v260 = vpack.c.bf16 %v252, %v251
    %v261 = vld [vmem:[%s3] sm:$0xf]
    %v262 = vld [vmem:[%s3 + $0x4] sm:$0xf]
    %v263 = vld [vmem:[%s3 + $0x8] sm:$0xf]
    %v264 = vld [vmem:[%s3 + $0xc] sm:$0xf]
    %v265 = vld [vmem:[%s4] sm:$0x1]
    %v267 = vlaneseq
    %v268 = vshrl.u32 %v267, 7
    %v269 = vsub.s32 0, %v268
    %v270 = vrot.slane %v265, %v269
    %v276 = vunpack.c.l.b16 %v261
    %v277 = vunpack.c.l.b16 %v262
    %v278 = vunpack.c.l.b16 %v263
    %v279 = vunpack.c.l.b16 %v264
    %v280 = vpack.c.b16 %v277, %v276
    %v281 = vpack.c.b16 %v279, %v278
    %v285 = vsel %vm115, %v253, 0
    %v288 = vsel %vm115, %v254, 0
    %v291 = vsel %vm115, %v255, 0
    %v294 = vsel %vm115, %v256, 0
    %v297 = vsel %vm115, %v257, 0
    %v300 = vsel %vm115, %v258, 0
    %v303 = vsel %vm115, %v259, 0
    %v306 = vsel %vm115, %v260, 0
    %308 = vmatprep.subr.bf16.mxu0 0
    %309 = vmatpush1.bf16.msra.mxu0 0
    %310 = vmatprep.subr.bf16.mxu0 0
    %311 = vmatpush1.bf16.msra.mxu0 0
    %312 = vmatprep.subr.bf16.mxu0 0
    %313 = vmatpush1.bf16.msra.mxu0 0
    %314 = vmatprep.subr.bf16.mxu0 0
    %315 = vmatpush1.bf16.msra.mxu0 0
    %316 = vmatprep.subr.bf16.mxu0 0
    %317 = vmatpush1.bf16.msra.mxu0 0
    %318 = vmatprep.subr.bf16.mxu0 0
    %319 = vmatpush1.bf16.msra.mxu0 0
    %320 = vmatprep.subr.bf16.mxu0 0
    %321 = vmatpush1.bf16.msra.mxu0 %v281
    %322 = vmatprep.subr.bf16.mxu0 0
    %323 = vmatpush1.bf16.msra.mxu0 %v280
    %324 = vmatprep.subr.bf16.mxu0 0
    %325 = vmatpush2.bf16.msra.mxu0 0
    %326 = vmatprep.subr.bf16.mxu0 0
    %327 = vmatpush2.bf16.msra.mxu0 0
    %328 = vmatprep.subr.bf16.mxu0 0
    %329 = vmatpush2.bf16.msra.mxu0 0
    %330 = vmatprep.subr.bf16.mxu0 0
    %331 = vmatpush2.bf16.msra.mxu0 0
    %332 = vmatprep.subr.bf16.mxu0 0
    %333 = vmatpush2.bf16.msra.mxu0 0
    %334 = vmatprep.subr.bf16.mxu0 0
    %335 = vmatpush2.bf16.msra.mxu0 0
    %336 = vmatprep.subr.bf16.mxu0 0
    %337 = vmatpush2.bf16.msra.mxu0 0
    %338 = vmatprep.subr.bf16.mxu0 0
    %339 = vmatpush2.bf16.msra.mxu0 0
    %340 = vmatprep.mubr.bf16.mxu0 0
    %341 = vmatmul.mubr.bf16.gmra.mxu0 %v285
    %v342 = vpop.f32.mrf.mxu0
    %v343 = vadd.f32 %v270, %v342
    %v344 = vpop.f32.mrf.mxu0
    %v345 = vpop.f32.mrf.mxu0
    %v346 = vadd.f32 %v270, %v345
    %v347 = vpop.f32.mrf.mxu0
    %348 = vmatprep.mubr.bf16.mxu0 0
    %349 = vmatmul.mubr.bf16.gmra.mxu0 %v288
    %v350 = vpop.f32.mrf.mxu0
    %v351 = vadd.f32 %v270, %v350
    %v352 = vpop.f32.mrf.mxu0
    %v353 = vpop.f32.mrf.mxu0
    %v354 = vadd.f32 %v270, %v353
    %v355 = vpop.f32.mrf.mxu0
    %356 = vmatprep.mubr.bf16.mxu0 0
    %357 = vmatmul.mubr.bf16.gmra.mxu0 %v291
    %v358 = vpop.f32.mrf.mxu0
    %v359 = vadd.f32 %v270, %v358
    %v360 = vpop.f32.mrf.mxu0
    %v361 = vpop.f32.mrf.mxu0
    %v362 = vadd.f32 %v270, %v361
    %v363 = vpop.f32.mrf.mxu0
    %364 = vmatprep.mubr.bf16.mxu0 0
    %365 = vmatmul.mubr.bf16.gmra.mxu0 %v294
    %v366 = vpop.f32.mrf.mxu0
    %v367 = vadd.f32 %v270, %v366
    %v368 = vpop.f32.mrf.mxu0
    %v369 = vpop.f32.mrf.mxu0
    %v370 = vadd.f32 %v270, %v369
    %v371 = vpop.f32.mrf.mxu0
    %372 = vmatprep.mubr.bf16.mxu0 0
    %373 = vmatmul.mubr.bf16.gmra.mxu0 %v297
    %v374 = vpop.f32.mrf.mxu0
    %v375 = vadd.f32 %v270, %v374
    %v376 = vpop.f32.mrf.mxu0
    %v377 = vpop.f32.mrf.mxu0
    %v378 = vadd.f32 %v270, %v377
    %v379 = vpop.f32.mrf.mxu0
    %380 = vmatprep.mubr.bf16.mxu0 0
    %381 = vmatmul.mubr.bf16.gmra.mxu0 %v300
    %v382 = vpop.f32.mrf.mxu0
    %v383 = vadd.f32 %v270, %v382
    %v384 = vpop.f32.mrf.mxu0
    %v385 = vpop.f32.mrf.mxu0
    %v386 = vadd.f32 %v270, %v385
    %v387 = vpop.f32.mrf.mxu0
    %388 = vmatprep.mubr.bf16.mxu0 0
    %389 = vmatmul.mubr.bf16.gmra.mxu0 %v303
    %v390 = vpop.f32.mrf.mxu0
    %v391 = vadd.f32 %v270, %v390
    %v392 = vpop.f32.mrf.mxu0
    %v393 = vpop.f32.mrf.mxu0
    %v394 = vadd.f32 %v270, %v393
    %v395 = vpop.f32.mrf.mxu0
    %396 = vmatprep.mubr.bf16.mxu0 0
    %397 = vmatmul.mubr.bf16.gmra.mxu0 %v306
    %v398 = vpop.f32.mrf.mxu0
    %v399 = vadd.f32 %v270, %v398
    %v400 = vpop.f32.mrf.mxu0
    %v401 = vpop.f32.mrf.mxu0
    %v402 = vadd.f32 %v270, %v401
    %v403 = vpop.f32.mrf.mxu0
    %404 = vdwg.mxu0
    %v405 = vmax.f32 %v343, 0.0
    %v406 = vmax.f32 %v346, 0.0
    %v407 = vmax.f32 %v351, 0.0
    %v408 = vmax.f32 %v354, 0.0
    %v409 = vmax.f32 %v359, 0.0
    %v410 = vmax.f32 %v362, 0.0
    %v411 = vmax.f32 %v367, 0.0
    %v412 = vmax.f32 %v370, 0.0
    %v413 = vmax.f32 %v375, 0.0
    %v414 = vmax.f32 %v378, 0.0
    %v415 = vmax.f32 %v383, 0.0
    %v416 = vmax.f32 %v386, 0.0
    %v417 = vmax.f32 %v391, 0.0
    %v418 = vmax.f32 %v394, 0.0
    %v419 = vmax.f32 %v399, 0.0
    %v420 = vmax.f32 %v402, 0.0
    %v421 = vpack.c.bf16 %v406, %v405
    %v422 = vpack.c.bf16 %v408, %v407
    %v423 = vpack.c.bf16 %v410, %v409
    %v424 = vpack.c.bf16 %v412, %v411
    %v425 = vpack.c.bf16 %v414, %v413
    %v426 = vpack.c.bf16 %v416, %v415
    %v427 = vpack.c.bf16 %v418, %v417
    %v428 = vpack.c.bf16 %v420, %v419
    %v429 = vld [vmem:[%s5] sm:$0xf]
    %v430 = vld [vmem:[%s5 + $0x4] sm:$0xf]
    %v431 = vld [vmem:[%s6] sm:$0x1]
    %v433 = vlaneseq
    %v434 = vshrl.u32 %v433, 7
    %v435 = vsub.s32 0, %v434
    %v436 = vrot.slane %v431, %v435
    %v440 = vunpack.c.l.b16 %v429
    %v441 = vunpack.c.l.b16 %v430
    %v442 = vpack.c.b16 %v441, %v440
    %vm444 = vcmask 130048
    %v446 = vsel %vm444, %v421, 0
    %v449 = vsel %vm444, %v422, 0
    %v452 = vsel %vm444, %v423, 0
    %v455 = vsel %vm444, %v424, 0
    %v458 = vsel %vm444, %v425, 0
    %v461 = vsel %vm444, %v426, 0
    %v464 = vsel %vm444, %v427, 0
    %v467 = vsel %vm444, %v428, 0
    %469 = vmatprep.subr.bf16.mxu0 0
    %470 = vmatpush1.bf16.msra.mxu0 0
    %471 = vmatprep.subr.bf16.mxu0 0
    %472 = vmatpush1.bf16.msra.mxu0 0
    %473 = vmatprep.subr.bf16.mxu0 0
    %474 = vmatpush1.bf16.msra.mxu0 0
    %475 = vmatprep.subr.bf16.mxu0 0
    %476 = vmatpush1.bf16.msra.mxu0 0
    %477 = vmatprep.subr.bf16.mxu0 0
    %478 = vmatpush1.bf16.msra.mxu0 0
    %479 = vmatprep.subr.bf16.mxu0 0
    %480 = vmatpush1.bf16.msra.mxu0 0
    %481 = vmatprep.subr.bf16.mxu0 0
    %482 = vmatpush1.bf16.msra.mxu0 0
    %483 = vmatprep.subr.bf16.mxu0 0
    %484 = vmatpush1.bf16.msra.mxu0 %v442
    %485 = vmatprep.subr.bf16.mxu0 0
    %486 = vmatpush2.bf16.msra.mxu0 0
    %487 = vmatprep.subr.bf16.mxu0 0
    %488 = vmatpush2.bf16.msra.mxu0 0
    %489 = vmatprep.subr.bf16.mxu0 0
    %490 = vmatpush2.bf16.msra.mxu0 0
    %491 = vmatprep.subr.bf16.mxu0 0
    %492 = vmatpush2.bf16.msra.mxu0 0
    %493 = vmatprep.subr.bf16.mxu0 0
    %494 = vmatpush2.bf16.msra.mxu0 0
    %495 = vmatprep.subr.bf16.mxu0 0
    %496 = vmatpush2.bf16.msra.mxu0 0
    %497 = vmatprep.subr.bf16.mxu0 0
    %498 = vmatpush2.bf16.msra.mxu0 0
    %499 = vmatprep.subr.bf16.mxu0 0
    %500 = vmatpush2.bf16.msra.mxu0 0
    %501 = vmatprep.mubr.bf16.mxu0 0
    %502 = vmatmul.mubr.bf16.gmra.mxu0 %v446
    %v503 = vpop.f32.mrf.mxu0
    %v504 = vadd.f32 %v436, %v503
    %v505 = vpop.f32.mrf.mxu0
    %v506 = vpop.f32.mrf.mxu0
    %v507 = vadd.f32 %v436, %v506
    %v508 = vpop.f32.mrf.mxu0
    %509 = vmatprep.mubr.bf16.mxu0 0
    %510 = vmatmul.mubr.bf16.gmra.mxu0 %v449
    %v511 = vpop.f32.mrf.mxu0
    %v512 = vadd.f32 %v436, %v511
    %v513 = vpop.f32.mrf.mxu0
    %v514 = vpop.f32.mrf.mxu0
    %v515 = vadd.f32 %v436, %v514
    %v516 = vpop.f32.mrf.mxu0
    %517 = vmatprep.mubr.bf16.mxu0 0
    %518 = vmatmul.mubr.bf16.gmra.mxu0 %v452
    %v519 = vpop.f32.mrf.mxu0
    %v520 = vadd.f32 %v436, %v519
    %v521 = vpop.f32.mrf.mxu0
    %v522 = vpop.f32.mrf.mxu0
    %v523 = vadd.f32 %v436, %v522
    %v524 = vpop.f32.mrf.mxu0
    %525 = vmatprep.mubr.bf16.mxu0 0
    %526 = vmatmul.mubr.bf16.gmra.mxu0 %v455
    %v527 = vpop.f32.mrf.mxu0
    %v528 = vadd.f32 %v436, %v527
    %v529 = vpop.f32.mrf.mxu0
    %v530 = vpop.f32.mrf.mxu0
    %v531 = vadd.f32 %v436, %v530
    %v532 = vpop.f32.mrf.mxu0
    %533 = vmatprep.mubr.bf16.mxu0 0
    %534 = vmatmul.mubr.bf16.gmra.mxu0 %v458
    %v535 = vpop.f32.mrf.mxu0
    %v536 = vadd.f32 %v436, %v535
    %v537 = vpop.f32.mrf.mxu0
    %v538 = vpop.f32.mrf.mxu0
    %v539 = vadd.f32 %v436, %v538
    %v540 = vpop.f32.mrf.mxu0
    %541 = vmatprep.mubr.bf16.mxu0 0
    %542 = vmatmul.mubr.bf16.gmra.mxu0 %v461
    %v543 = vpop.f32.mrf.mxu0
    %v544 = vadd.f32 %v436, %v543
    %v545 = vpop.f32.mrf.mxu0
    %v546 = vpop.f32.mrf.mxu0
    %v547 = vadd.f32 %v436, %v546
    %v548 = vpop.f32.mrf.mxu0
    %549 = vmatprep.mubr.bf16.mxu0 0
    %550 = vmatmul.mubr.bf16.gmra.mxu0 %v464
    %v551 = vpop.f32.mrf.mxu0
    %v552 = vadd.f32 %v436, %v551
    %v553 = vpop.f32.mrf.mxu0
    %v554 = vpop.f32.mrf.mxu0
    %v555 = vadd.f32 %v436, %v554
    %v556 = vpop.f32.mrf.mxu0
    %557 = vmatprep.mubr.bf16.mxu0 0
    %558 = vmatmul.mubr.bf16.gmra.mxu0 %v467
    %v559 = vpop.f32.mrf.mxu0
    %v560 = vadd.f32 %v436, %v559
    %v561 = vpop.f32.mrf.mxu0
    %v562 = vpop.f32.mrf.mxu0
    %v563 = vadd.f32 %v436, %v562
    %v564 = vpop.f32.mrf.mxu0
    %565 = vdwg.mxu0
    %v566 = vmax.f32 %v504, 0.0
    %v567 = vmax.f32 %v507, 0.0
    %v568 = vmax.f32 %v512, 0.0
    %v569 = vmax.f32 %v515, 0.0
    %v570 = vmax.f32 %v520, 0.0
    %v571 = vmax.f32 %v523, 0.0
    %v572 = vmax.f32 %v528, 0.0
    %v573 = vmax.f32 %v531, 0.0
    %v574 = vmax.f32 %v536, 0.0
    %v575 = vmax.f32 %v539, 0.0
    %v576 = vmax.f32 %v544, 0.0
    %v577 = vmax.f32 %v547, 0.0
    %v578 = vmax.f32 %v552, 0.0
    %v579 = vmax.f32 %v555, 0.0
    %v580 = vmax.f32 %v560, 0.0
    %v581 = vmax.f32 %v563, 0.0
    %v582 = vld [vmem:[%s7] sm:$0x1]
    %v583 = vld [vmem:[#allocation2] sm:$0x1]
    %585 = vset.pattern.permute.xlu0 0
    %586 = vperm.xlu0 %585, %v583
    %v587 = vpop.permute.xlu0 %586
    %v589 = vlaneseq
    %v590 = vshrl.u32 %v589, 7
    %v591 = vsub.s32 0, %v590
    %v592 = vrot.slane %v587, %v591
    %v594 = vsel %vm444, %v582, 0
    %v597 = vsel %vm444, %v566, 0
    %v600 = vsel %vm444, %v567, 0
    %v603 = vsel %vm444, %v568, 0
    %v606 = vsel %vm444, %v569, 0
    %v609 = vsel %vm444, %v570, 0
    %v612 = vsel %vm444, %v571, 0
    %v615 = vsel %vm444, %v572, 0
    %v618 = vsel %vm444, %v573, 0
    %v621 = vsel %vm444, %v574, 0
    %v624 = vsel %vm444, %v575, 0
    %v627 = vsel %vm444, %v576, 0
    %v630 = vsel %vm444, %v577, 0
    %v633 = vsel %vm444, %v578, 0
    %v636 = vsel %vm444, %v579, 0
    %v639 = vsel %vm444, %v580, 0
    %v642 = vsel %vm444, %v581, 0
    %644 = vmatprep.subr.mxu0 0.0
    %645 = vmatpush1.xpose.msra.mxu0 %v642
    %646 = vmatprep.subr.mxu0 0.0
    %647 = vmatpush1.xpose.msra.mxu0 %v639
    %648 = vmatprep.subr.mxu0 0.0
    %649 = vmatpush1.xpose.msra.mxu0 %v636
    %650 = vmatprep.subr.mxu0 0.0
    %651 = vmatpush1.xpose.msra.mxu0 %v633
    %652 = vmatprep.subr.mxu0 0.0
    %653 = vmatpush1.xpose.msra.mxu0 %v630
    %654 = vmatprep.subr.mxu0 0.0
    %655 = vmatpush1.xpose.msra.mxu0 %v627
    %656 = vmatprep.subr.mxu0 0.0
    %657 = vmatpush1.xpose.msra.mxu0 %v624
    %658 = vmatprep.subr.mxu0 0.0
    %659 = vmatpush1.xpose.msra.mxu0 %v621
    %660 = vmatprep.subr.mxu0 0.0
    %661 = vmatpush1.xpose.msra.mxu0 %v618
    %662 = vmatprep.subr.mxu0 0.0
    %663 = vmatpush1.xpose.msra.mxu0 %v615
    %664 = vmatprep.subr.mxu0 0.0
    %665 = vmatpush1.xpose.msra.mxu0 %v612
    %666 = vmatprep.subr.mxu0 0.0
    %667 = vmatpush1.xpose.msra.mxu0 %v609
    %668 = vmatprep.subr.mxu0 0.0
    %669 = vmatpush1.xpose.msra.mxu0 %v606
    %670 = vmatprep.subr.mxu0 0.0
    %671 = vmatpush1.xpose.msra.mxu0 %v603
    %672 = vmatprep.subr.mxu0 0.0
    %673 = vmatpush1.xpose.msra.mxu0 %v600
    %674 = vmatprep.subr.mxu0 0.0
    %675 = vmatpush1.xpose.msra.mxu0 %v597
    %676 = vmatprep.subr.mxu0 0.0
    %677 = vmatpush2.xpose.msra.mxu0 0.0
    %678 = vmatprep.subr.mxu0 0.0
    %679 = vmatpush2.xpose.msra.mxu0 0.0
    %680 = vmatprep.subr.mxu0 0.0
    %681 = vmatpush2.xpose.msra.mxu0 0.0
    %682 = vmatprep.subr.mxu0 0.0
    %683 = vmatpush2.xpose.msra.mxu0 0.0
    %684 = vmatprep.subr.mxu0 0.0
    %685 = vmatpush2.xpose.msra.mxu0 0.0
    %686 = vmatprep.subr.mxu0 0.0
    %687 = vmatpush2.xpose.msra.mxu0 0.0
    %688 = vmatprep.subr.mxu0 0.0
    %689 = vmatpush2.xpose.msra.mxu0 0.0
    %690 = vmatprep.subr.mxu0 0.0
    %691 = vmatpush2.xpose.msra.mxu0 0.0
    %692 = vmatprep.subr.mxu0 0.0
    %693 = vmatpush2.xpose.msra.mxu0 0.0
    %694 = vmatprep.subr.mxu0 0.0
    %695 = vmatpush2.xpose.msra.mxu0 0.0
    %696 = vmatprep.subr.mxu0 0.0
    %697 = vmatpush2.xpose.msra.mxu0 0.0
    %698 = vmatprep.subr.mxu0 0.0
    %699 = vmatpush2.xpose.msra.mxu0 0.0
    %700 = vmatprep.subr.mxu0 0.0
    %701 = vmatpush2.xpose.msra.mxu0 0.0
    %702 = vmatprep.subr.mxu0 0.0
    %703 = vmatpush2.xpose.msra.mxu0 0.0
    %704 = vmatprep.subr.mxu0 0.0
    %705 = vmatpush2.xpose.msra.mxu0 0.0
    %706 = vmatprep.subr.mxu0 0.0
    %707 = vmatpush2.xpose.msra.mxu0 0.0
    %708 = vmatprep.mubr.f32.mxu0 0.0
    %709 = vmatmul.mubr.f32.gmra.mxu0 %v594
    %v710 = vpop.f32.mrf.mxu0
    %v711 = vadd.f32 %v592, %v710
    %v712 = vpop.f32.mrf.mxu0
    %713 = vdwg.mxu0
    %v714 = vsub.f32 0.0, %v711
    %v715 = vmul.f32 %v714, 1.442695
    %v716 = vpow.pop %v715
    %v717 = vadd.f32 %v716, 1.0
    %718 = vst [vmem:[#allocation3] sm:$0x1] %v717
    %v719 = vld [vmem:[#allocation3] sm:$0x1]
    %v720 = vrcp.pop %v719
    %721 = vst [vmem:[#allocation3] sm:$0x1] %v720
    // Predicated region
    $region38: #{tpu_custom_call.1} parent=1 // pred_check
      _
    $region39: #{tpu_custom_call.1} parent=1 // pred_check_branch
      %723 = sbr.rel (0) target = $region41
    $region40: #{tpu_custom_call.1} parent=1 // pred_region
      %s725 = ssub.s32 16, 16
      %726 = vsyncadd [#allocation4], %s725
      %s728 = sshll.u32 [#allocation3], 4
      %s729 = int_to_ptr.vmem [resolvable:$true] %s728
      %731 = dma.vmem_to_hbm [thread:$0]  %s729, 16, %s9, [#allocation4]
    $region41: #{tpu_custom_call.1} parent=1 // pred_fallthru
      _
    // Predicated region
    $region42: #{tpu_custom_call.1} parent=1 // pred_check
      _
    $region43: #{tpu_custom_call.1} parent=1 // pred_check_branch
      %733 = sbr.rel (0) target = $region45
    $region44: #{tpu_custom_call.1} parent=1 // pred_region
      %734 = dma.done [#allocation4], 16
    $region45: #{tpu_custom_call.1} parent=1 // pred_fallthru
      _
    %735 = vsyncpa [#allocation4], 1

</llo_original>
